<compile_context>
chip_gen: v7x
topology: tpu7x:2x2x1
jax: 0.10.0
libtpu: 0.0.40
codegen_flags: <defaults>
</compile_context>

<pallas_src>
import numpy as np

import jax
import jax.numpy as jnp
from jax.experimental import pallas as pl
from jax.experimental.pallas import tpu as pltpu


# ----------------------------------------------------------------------------
# Fused SELayer kernel: pool + fc1 (Linear->ReLU->Linear->Sigmoid) + scale.
# ----------------------------------------------------------------------------
def _se_kernel(x_ref, w1_ref, w2_ref, o_ref):
    # x_ref: (B, C, H*W) float32 — lane dim H*W is a multiple of 128 (lane-dense).
    x = x_ref[...]
    hw = x.shape[-1]
    inv_hw = jnp.float32(1.0 / hw)

    # Global average pool: cross-lane sum (XLU) + one constant multiply.
    y = jnp.sum(x, axis=-1) * inv_hw                                       # (B, C)

    # fc1 branch: Linear -> ReLU -> Linear -> Sigmoid, f32 accumulation on the MXU.
    h = jnp.maximum(
        jnp.dot(y, w1_ref[...], preferred_element_type=jnp.float32), 0.0)  # (B, C//r)
    s = jax.nn.sigmoid(
        jnp.dot(h, w2_ref[...], preferred_element_type=jnp.float32))       # (B, C)

    # Broadcast scale over the spatial (lane) dimension.
    o_ref[...] = x * s[:, :, None]


def se_layer(x_nchw, w_fc1_0, w_fc1_1):
    """SELayer forward.

    x_nchw : (B, C, H, W) float32
    w_fc1_0: (C//r, C)   torch nn.Linear(channel, channel//r, bias=False).weight
    w_fc1_1: (C, C//r)   torch nn.Linear(channel//r, channel, bias=False).weight
    """
    B, C, H, W = x_nchw.shape
    HW = H * W
    # Contiguous NCHW -> (B, C, H*W): free reshape, puts H*W elements in the lane dim.
    x_flat = x_nchw.reshape(B, C, HW)
    w1 = jnp.transpose(w_fc1_0)            # (C, C//r)   so that y @ w1
    w2 = jnp.transpose(w_fc1_1)            # (C//r, C)   so that h @ w2

    out = pl.pallas_call(
        _se_kernel,
        out_shape=jax.ShapeDtypeStruct((B, C, HW), jnp.float32),
        # Whole arrays resident in VMEM; no grid (single block, no pipeline overhead).
        in_specs=[
            pl.BlockSpec(memory_space=pltpu.MemorySpace.VMEM),
            pl.BlockSpec(memory_space=pltpu.MemorySpace.VMEM),
            pl.BlockSpec(memory_space=pltpu.MemorySpace.VMEM),
        ],
        out_specs=pl.BlockSpec(memory_space=pltpu.MemorySpace.VMEM),
        compiler_params=pltpu.CompilerParams(vmem_limit_bytes=32 * 1024 * 1024),
    )(x_flat, w1, w2)
    return out.reshape(B, C, H, W)


# ----------------------------------------------------------------------------
# Pure-JAX reference (for correctness check).
# ----------------------------------------------------------------------------
def se_layer_ref(x, w_fc1_0, w_fc1_1):
    y = jnp.mean(x, axis=(2, 3))                              # (B, C)
    h = jnp.maximum(y @ w_fc1_0.T, 0.0)
    s = jax.nn.sigmoid(h @ w_fc1_1.T)
    return x * s[:, :, None, None]


if __name__ == "__main__":
    B, C, H, W = 2, 32, 16, 16          # channel divisible by reduction=16
    reduction = 16
    Cr = C // reduction

    key = jax.random.PRNGKey(0)
    kx, k1, k2 = jax.random.split(key, 3)
    x = jax.random.normal(kx, (B, C, H, W), jnp.float32)
    w_fc1_0 = jax.random.normal(k1, (Cr, C), jnp.float32) / np.sqrt(C)
    w_fc1_1 = jax.random.normal(k2, (C, Cr), jnp.float32) / np.sqrt(Cr)

    fwd = jax.jit(se_layer)
    out = jax.block_until_ready(fwd(x, w_fc1_0, w_fc1_1))

    ref = se_layer_ref(x, w_fc1_0, w_fc1_1)
    assert out.shape == (B, C, H, W), out.shape
    assert bool(jnp.all(jnp.isfinite(out)))
    np.testing.assert_allclose(np.asarray(out), np.asarray(ref), rtol=1e-5, atol=1e-5)
    print("KERNEL_OK")
</pallas_src>

<mosaic_0001>
module attributes {stable_mosaic.version = 11 : i64} {
  func.func @_se_kernel(%arg0: memref<2x32x256xf32, #tpu.memory_space<vmem>>, %arg1: memref<32x2xf32, #tpu.memory_space<vmem>>, %arg2: memref<2x32xf32, #tpu.memory_space<vmem>>, %arg3: memref<2x32x256xf32, #tpu.memory_space<vmem>>) attributes {dimension_semantics = [], scalar_prefetch = 0 : i64, scratch_operands = 0 : i64, tpu.core_type = #tpu.core_type<tc>} {
    %c0 = arith.constant 0 : index
    %c0_0 = arith.constant 0 : index
    %c0_1 = arith.constant 0 : index
    %0 = vector.load %arg0[%c0, %c0_0, %c0_1] : memref<2x32x256xf32, #tpu.memory_space<vmem>>, vector<2x32x256xf32>
    %cst = arith.constant dense<0.000000e+00> : vector<2x32xf32>
    %1 = vector.multi_reduction <add>, %0, %cst [2] : vector<2x32x256xf32> to vector<2x32xf32>
    %cst_2 = arith.constant 3.906250e-03 : f32
    %2 = vector.broadcast %cst_2 : f32 to vector<2x32xf32>
    %3 = arith.mulf %1, %2 : vector<2x32xf32>
    %c0_3 = arith.constant 0 : index
    %c0_4 = arith.constant 0 : index
    %4 = vector.load %arg1[%c0_3, %c0_4] : memref<32x2xf32, #tpu.memory_space<vmem>>, vector<32x2xf32>
    %cst_5 = arith.constant dense<0.000000e+00> : vector<2x2xf32>
    %5 = tpu.matmul %3, %4, %cst_5 {dimension_numbers = #tpu.dot_dimension_numbers<[1], [0], [0], [1], [0, 0, 1, 1], [], []>} : vector<2x32xf32>, vector<32x2xf32>, vector<2x2xf32> -> vector<2x2xf32>
    %cst_6 = arith.constant 0.000000e+00 : f32
    %6 = vector.broadcast %cst_6 : f32 to vector<2x2xf32>
    %7 = arith.maximumf %5, %6 : vector<2x2xf32>
    %c0_7 = arith.constant 0 : index
    %c0_8 = arith.constant 0 : index
    %8 = vector.load %arg2[%c0_7, %c0_8] : memref<2x32xf32, #tpu.memory_space<vmem>>, vector<2x32xf32>
    %cst_9 = arith.constant dense<0.000000e+00> : vector<2x32xf32>
    %9 = tpu.matmul %7, %8, %cst_9 {dimension_numbers = #tpu.dot_dimension_numbers<[1], [0], [0], [1], [0, 0, 1, 1], [], []>} : vector<2x2xf32>, vector<2x32xf32>, vector<2x32xf32> -> vector<2x32xf32>
    %10 = arith.negf %9 : vector<2x32xf32>
    %11 = math.exp %10 : vector<2x32xf32>
    %cst_10 = arith.constant 1.000000e+00 : f32
    %12 = vector.broadcast %cst_10 : f32 to vector<2x32xf32>
    %13 = arith.addf %12, %11 : vector<2x32xf32>
    %14 = arith.divf %12, %13 : vector<2x32xf32>
    %15 = vector.shape_cast %14 : vector<2x32xf32> to vector<2x32x1xf32>
    %16 = vector.broadcast %15 : vector<2x32x1xf32> to vector<2x32x256xf32>
    %17 = arith.mulf %0, %16 : vector<2x32x256xf32>
    %c0_11 = arith.constant 0 : index
    %c0_12 = arith.constant 0 : index
    %c0_13 = arith.constant 0 : index
    %18 = vector.load %arg3[%c0_11, %c0_12, %c0_13] : memref<2x32x256xf32, #tpu.memory_space<vmem>>, vector<2x32x256xf32>
    tpu.vector_store %arg3[%c0_11, %c0_12, %c0_13], %17 {strides = array<i32>} : memref<2x32x256xf32, #tpu.memory_space<vmem>>, vector<2x32x256xf32>,
    return
  }
}

</mosaic_0001>

<llo_original>
// kernel: se_layer.1
$region0: #{se_layer.1}
  #allocation0 [shape = 'u32[]', space=smem, size = 0x4, offset = 0x4, fixed_abs, tag = 'smem constant byte address 0x4 - core index']
  #allocation1 [shape = 'u32[144,128]{1,0:T(1,128)}', space=vmem, size = 0x12000, scoped, tag = 'internal scratch']
  %s0 = inlined_call_operand.vmem [shape: f32[2,32,256], index: 0, kind: input, shape index: {}]
  %s1 = inlined_call_operand.vmem [shape: f32[32,2], index: 1, kind: input, shape index: {}]
  %s2 = inlined_call_operand.vmem [shape: f32[2,32], index: 2, kind: input, shape index: {}]
  %s3 = inlined_call_operand.vmem [shape: f32[2,32,256], index: 3, kind: output, shape index: {}]
  %s4 = sld [smem:[#allocation0]]
  $region22: #{se_layer.1} parent=0
    _
  %s6 = ssub.s32 1, %s4
  %s7 = scalar_select 0, %s6, %s4
  // Predicated region
  $region2: #{se_layer.1} parent=0 // pred_check
    _
  $region3: #{se_layer.1} parent=0 // pred_check_branch
    %9 = sbr.rel (0) target = $region5
  $region4: #{se_layer.1} parent=0 // pred_region
    _
  $region5: #{se_layer.1} parent=0 // pred_fallthru
    _
  // Predicated region
  $region6: #{se_layer.1} parent=0 // pred_check
    _
  $region7: #{se_layer.1} parent=0 // pred_check_branch
    %11 = sbr.rel (0) target = $region9
  $region8: #{se_layer.1} parent=0 // pred_region
    _
  $region9: #{se_layer.1} parent=0 // pred_fallthru
    _
  // Predicated region
  $region10: #{se_layer.1} parent=0 // pred_check
    _
  $region11: #{se_layer.1} parent=0 // pred_check_branch
    %13 = sbr.rel (0) target = $region13
  $region12: #{se_layer.1} parent=0 // pred_region
    _
  $region13: #{se_layer.1} parent=0 // pred_fallthru
    _
  %v14 = vld [vmem:[%s0] sm:$0xff]
  %v15 = vld [vmem:[%s0 + $0x8] sm:$0xff]
  %v16 = vld [vmem:[%s0 + $0x10] sm:$0xff]
  %v17 = vld [vmem:[%s0 + $0x18] sm:$0xff]
  %v18 = vld [vmem:[%s0 + $0x20] sm:$0xff]
  %v19 = vld [vmem:[%s0 + $0x28] sm:$0xff]
  %v20 = vld [vmem:[%s0 + $0x30] sm:$0xff]
  %v21 = vld [vmem:[%s0 + $0x38] sm:$0xff]
  %v22 = vld [vmem:[%s0 + $0x40] sm:$0xff]
  %v23 = vld [vmem:[%s0 + $0x48] sm:$0xff]
  %v24 = vld [vmem:[%s0 + $0x50] sm:$0xff]
  %v25 = vld [vmem:[%s0 + $0x58] sm:$0xff]
  %v26 = vld [vmem:[%s0 + $0x60] sm:$0xff]
  %v27 = vld [vmem:[%s0 + $0x68] sm:$0xff]
  %v28 = vld [vmem:[%s0 + $0x70] sm:$0xff]
  %v29 = vld [vmem:[%s0 + $0x78] sm:$0xff]
  %v30 = vadd.f32 %v14, %v15
  %31 = vadd.xlane.f32.xlu0 %v30
  %v32 = vpop.xlane.xlu0 %31
  %v33 = vadd.f32 %v16, %v17
  %34 = vadd.xlane.f32.xlu0 %v33
  %v35 = vpop.xlane.xlu0 %34
  %v36 = vadd.f32 %v18, %v19
  %37 = vadd.xlane.f32.xlu0 %v36
  %v38 = vpop.xlane.xlu0 %37
  %v39 = vadd.f32 %v20, %v21
  %40 = vadd.xlane.f32.xlu0 %v39
  %v41 = vpop.xlane.xlu0 %40
  %v42 = vadd.f32 %v22, %v23
  %43 = vadd.xlane.f32.xlu0 %v42
  %v44 = vpop.xlane.xlu0 %43
  %v45 = vadd.f32 %v24, %v25
  %46 = vadd.xlane.f32.xlu0 %v45
  %v47 = vpop.xlane.xlu0 %46
  %v48 = vadd.f32 %v26, %v27
  %49 = vadd.xlane.f32.xlu0 %v48
  %v50 = vpop.xlane.xlu0 %49
  %v51 = vadd.f32 %v28, %v29
  %52 = vadd.xlane.f32.xlu0 %v51
  %v53 = vpop.xlane.xlu0 %52
  %v54 = vmul.f32 %v32, 0.00390625
  %v55 = vmul.f32 %v35, 0.00390625
  %v56 = vmul.f32 %v38, 0.00390625
  %v57 = vmul.f32 %v41, 0.00390625
  %v58 = vmul.f32 %v44, 0.00390625
  %v59 = vmul.f32 %v47, 0.00390625
  %v60 = vmul.f32 %v50, 0.00390625
  %v61 = vmul.f32 %v53, 0.00390625
  %v62 = vld [vmem:[%s1] sm:$0xff]
  %v63 = vld [vmem:[%s1 + $0x8] sm:$0xff]
  %v64 = vld [vmem:[%s1 + $0x10] sm:$0xff]
  %v65 = vld [vmem:[%s1 + $0x18] sm:$0xff]
  %v74 = vlaneseq
  %v75 = vand.u32 %v74, 127
  %v76 = vlaneseq
  %v77 = vshrl.u32 %v76, 7
  %v78 = vsub.s32 %v75, %v77
  %v79 = vrot.slane %v54, %v78
  %v80 = vadd.s32 %v75, 4294967288
  %v81 = vlaneseq
  %v82 = vshrl.u32 %v81, 7
  %v83 = vsub.s32 %v80, %v82
  %v84 = vrot.slane %v55, %v83
  %vm85 = vcmask 130112
  %v86 = vsel %vm85, %v84, %v79
  %v87 = vadd.s32 %v75, 4294967280
  %v88 = vlaneseq
  %v89 = vshrl.u32 %v88, 7
  %v90 = vsub.s32 %v87, %v89
  %v91 = vrot.slane %v56, %v90
  %vm92 = vcmask 195712
  %v93 = vsel %vm92, %v91, %v86
  %v94 = vadd.s32 %v75, 4294967272
  %v95 = vlaneseq
  %v96 = vshrl.u32 %v95, 7
  %v97 = vsub.s32 %v94, %v96
  %v98 = vrot.slane %v57, %v97
  %vm99 = vcmask 261312
  %v100 = vsel %vm99, %v98, %v93
  %v101 = vlaneseq
  %v102 = vshrl.u32 %v101, 7
  %v103 = vsub.s32 %v75, %v102
  %v104 = vrot.slane %v58, %v103
  %v105 = vlaneseq
  %v106 = vshrl.u32 %v105, 7
  %v107 = vsub.s32 %v80, %v106
  %v108 = vrot.slane %v59, %v107
  %v109 = vsel %vm85, %v108, %v104
  %v110 = vlaneseq
  %v111 = vshrl.u32 %v110, 7
  %v112 = vsub.s32 %v87, %v111
  %v113 = vrot.slane %v60, %v112
  %v114 = vsel %vm92, %v113, %v109
  %v115 = vlaneseq
  %v116 = vshrl.u32 %v115, 7
  %v117 = vsub.s32 %v94, %v116
  %v118 = vrot.slane %v61, %v117
  %v119 = vsel %vm99, %v118, %v114
  %vm120 = vcmask 1041409
  %v121 = vsel %vm120, %v119, %v100
  %vm122 = vcmask 261120
  %v123 = vsel %vm122, %v121, 0
  %125 = vmatprep.subr.mxu0 0.0
  %126 = vmatpush1.msra.mxu0 %v62
  %127 = vmatprep.subr.mxu0 0.0
  %128 = vmatpush1.msra.mxu0 %v63
  %129 = vmatprep.subr.mxu0 0.0
  %130 = vmatpush1.msra.mxu0 %v64
  %131 = vmatprep.subr.mxu0 0.0
  %132 = vmatpush1.msra.mxu0 %v65
  %133 = vmatprep.subr.mxu0 0.0
  %134 = vmatpush1.msra.mxu0 0.0
  %135 = vmatprep.subr.mxu0 0.0
  %136 = vmatpush1.msra.mxu0 0.0
  %137 = vmatprep.subr.mxu0 0.0
  %138 = vmatpush1.msra.mxu0 0.0
  %139 = vmatprep.subr.mxu0 0.0
  %140 = vmatpush1.msra.mxu0 0.0
  %141 = vmatprep.subr.mxu0 0.0
  %142 = vmatpush1.msra.mxu0 0.0
  %143 = vmatprep.subr.mxu0 0.0
  %144 = vmatpush1.msra.mxu0 0.0
  %145 = vmatprep.subr.mxu0 0.0
  %146 = vmatpush1.msra.mxu0 0.0
  %147 = vmatprep.subr.mxu0 0.0
  %148 = vmatpush1.msra.mxu0 0.0
  %149 = vmatprep.subr.mxu0 0.0
  %150 = vmatpush1.msra.mxu0 0.0
  %151 = vmatprep.subr.mxu0 0.0
  %152 = vmatpush1.msra.mxu0 0.0
  %153 = vmatprep.subr.mxu0 0.0
  %154 = vmatpush1.msra.mxu0 0.0
  %155 = vmatprep.subr.mxu0 0.0
  %156 = vmatpush1.msra.mxu0 0.0
  %157 = vmatprep.subr.mxu0 0.0
  %158 = vmatpush1.msra.mxu0 0.0
  %159 = vmatprep.subr.mxu0 0.0
  %160 = vmatpush1.msra.mxu0 0.0
  %161 = vmatprep.subr.mxu0 0.0
  %162 = vmatpush1.msra.mxu0 0.0
  %163 = vmatprep.subr.mxu0 0.0
  %164 = vmatpush1.msra.mxu0 0.0
  %165 = vmatprep.subr.mxu0 0.0
  %166 = vmatpush1.msra.mxu0 0.0
  %167 = vmatprep.subr.mxu0 0.0
  %168 = vmatpush1.msra.mxu0 0.0
  %169 = vmatprep.subr.mxu0 0.0
  %170 = vmatpush1.msra.mxu0 0.0
  %171 = vmatprep.subr.mxu0 0.0
  %172 = vmatpush1.msra.mxu0 0.0
  %173 = vmatprep.subr.mxu0 0.0
  %174 = vmatpush1.msra.mxu0 0.0
  %175 = vmatprep.subr.mxu0 0.0
  %176 = vmatpush1.msra.mxu0 0.0
  %177 = vmatprep.subr.mxu0 0.0
  %178 = vmatpush1.msra.mxu0 0.0
  %179 = vmatprep.subr.mxu0 0.0
  %180 = vmatpush1.msra.mxu0 0.0
  %181 = vmatprep.subr.mxu0 0.0
  %182 = vmatpush1.msra.mxu0 0.0
  %183 = vmatprep.subr.mxu0 0.0
  %184 = vmatpush1.msra.mxu0 0.0
  %185 = vmatprep.subr.mxu0 0.0
  %186 = vmatpush1.msra.mxu0 0.0
  %187 = vmatprep.subr.mxu0 0.0
  %188 = vmatpush1.msra.mxu0 0.0
  %189 = vmatprep.mubr.f32.mxu0 0.0
  %190 = vmatmul.mubr.f32.gmra.mrb[0].mxu0 %v123
  %v191 = vpop.f32.mrb[0].mxu0
  %v192 = vadd.f32 0.0, %v191
  %v193 = vpop.f32.mrb[0].mxu0
  %194 = vdwg.mxu0
  %v195 = vmax.f32 %v192, 0.0
  %v196 = vld [vmem:[%s2] sm:$0x3]
  %vm197 = vcmask 15360
  %v199 = vsel %vm197, %v195, 0
  %vm201 = vcmask 1041408
  %v203 = vsel %vm201, %v196, 0
  %205 = vmatprep.subr.mxu0 0.0
  %206 = vmatpush1.msra.mxu0 %v203
  %207 = vmatprep.subr.mxu0 0.0
  %208 = vmatpush1.msra.mxu0 0.0
  %209 = vmatprep.subr.mxu0 0.0
  %210 = vmatpush1.msra.mxu0 0.0
  %211 = vmatprep.subr.mxu0 0.0
  %212 = vmatpush1.msra.mxu0 0.0
  %213 = vmatprep.subr.mxu0 0.0
  %214 = vmatpush1.msra.mxu0 0.0
  %215 = vmatprep.subr.mxu0 0.0
  %216 = vmatpush1.msra.mxu0 0.0
  %217 = vmatprep.subr.mxu0 0.0
  %218 = vmatpush1.msra.mxu0 0.0
  %219 = vmatprep.subr.mxu0 0.0
  %220 = vmatpush1.msra.mxu0 0.0
  %221 = vmatprep.subr.mxu0 0.0
  %222 = vmatpush1.msra.mxu0 0.0
  %223 = vmatprep.subr.mxu0 0.0
  %224 = vmatpush1.msra.mxu0 0.0
  %225 = vmatprep.subr.mxu0 0.0
  %226 = vmatpush1.msra.mxu0 0.0
  %227 = vmatprep.subr.mxu0 0.0
  %228 = vmatpush1.msra.mxu0 0.0
  %229 = vmatprep.subr.mxu0 0.0
  %230 = vmatpush1.msra.mxu0 0.0
  %231 = vmatprep.subr.mxu0 0.0
  %232 = vmatpush1.msra.mxu0 0.0
  %233 = vmatprep.subr.mxu0 0.0
  %234 = vmatpush1.msra.mxu0 0.0
  %235 = vmatprep.subr.mxu0 0.0
  %236 = vmatpush1.msra.mxu0 0.0
  %237 = vmatprep.subr.mxu0 0.0
  %238 = vmatpush1.msra.mxu0 0.0
  %239 = vmatprep.subr.mxu0 0.0
  %240 = vmatpush1.msra.mxu0 0.0
  %241 = vmatprep.subr.mxu0 0.0
  %242 = vmatpush1.msra.mxu0 0.0
  %243 = vmatprep.subr.mxu0 0.0
  %244 = vmatpush1.msra.mxu0 0.0
  %245 = vmatprep.subr.mxu0 0.0
  %246 = vmatpush1.msra.mxu0 0.0
  %247 = vmatprep.subr.mxu0 0.0
  %248 = vmatpush1.msra.mxu0 0.0
  %249 = vmatprep.subr.mxu0 0.0
  %250 = vmatpush1.msra.mxu0 0.0
  %251 = vmatprep.subr.mxu0 0.0
  %252 = vmatpush1.msra.mxu0 0.0
  %253 = vmatprep.subr.mxu0 0.0
  %254 = vmatpush1.msra.mxu0 0.0
  %255 = vmatprep.subr.mxu0 0.0
  %256 = vmatpush1.msra.mxu0 0.0
  %257 = vmatprep.subr.mxu0 0.0
  %258 = vmatpush1.msra.mxu0 0.0
  %259 = vmatprep.subr.mxu0 0.0
  %260 = vmatpush1.msra.mxu0 0.0
  %261 = vmatprep.subr.mxu0 0.0
  %262 = vmatpush1.msra.mxu0 0.0
  %263 = vmatprep.subr.mxu0 0.0
  %264 = vmatpush1.msra.mxu0 0.0
  %265 = vmatprep.subr.mxu0 0.0
  %266 = vmatpush1.msra.mxu0 0.0
  %267 = vmatprep.subr.mxu0 0.0
  %268 = vmatpush1.msra.mxu0 0.0
  %269 = vmatprep.mubr.f32.mxu0 0.0
  %270 = vmatmul.mubr.f32.gmra.mrb[0].mxu0 %v199
  %v271 = vpop.f32.mrb[0].mxu0
  %v272 = vadd.f32 0.0, %v271
  %v273 = vpop.f32.mrb[0].mxu0
  %274 = vdwg.mxu0
  %v275 = vxor.u32 %v272, 2147483648
  %v276 = vmul.f32 %v275, 1.442695
  %v277 = vpow.pop %v276
  %v278 = vadd.f32 %v277, 1.0
  %v279 = vrcp.pop %v278
  %v280 = vmul.f32 1.0, %v279
  %v281 = vlaneseq
  %v282 = vshrl.u32 %v281, 7
  %v283 = vsub.s32 0, %v282
  %v284 = vrot.slane %v280, %v283
  %286 = vbcast.lane.b32.xlu0 %v284, 256
  %v287 = vpop.permute.xlu0 %286
  %s289 = sor.u32 256, 8
  %290 = vbcast.lane.b32.xlu0 %v284, %s289
  %v291 = vpop.permute.xlu0 %290
  %s293 = sor.u32 256, 16
  %294 = vbcast.lane.b32.xlu0 %v284, %s293
  %v295 = vpop.permute.xlu0 %294
  %s297 = sor.u32 256, 24
  %298 = vbcast.lane.b32.xlu0 %v284, %s297
  %v299 = vpop.permute.xlu0 %298
  %v300 = vlaneseq
  %v301 = vshrl.u32 %v300, 7
  %v302 = vsub.s32 1, %v301
  %v303 = vrot.slane %v280, %v302
  %305 = vbcast.lane.b32.xlu0 %v303, 256
  %v306 = vpop.permute.xlu0 %305
  %s308 = sor.u32 256, 8
  %309 = vbcast.lane.b32.xlu0 %v303, %s308
  %v310 = vpop.permute.xlu0 %309
  %s312 = sor.u32 256, 16
  %313 = vbcast.lane.b32.xlu0 %v303, %s312
  %v314 = vpop.permute.xlu0 %313
  %s316 = sor.u32 256, 24
  %317 = vbcast.lane.b32.xlu0 %v303, %s316
  %v318 = vpop.permute.xlu0 %317
  %v319 = vmul.f32 %v14, %v287
  %v320 = vmul.f32 %v15, %v287
  %v321 = vmul.f32 %v16, %v291
  %v322 = vmul.f32 %v17, %v291
  %v323 = vmul.f32 %v18, %v295
  %v324 = vmul.f32 %v19, %v295
  %v325 = vmul.f32 %v20, %v299
  %v326 = vmul.f32 %v21, %v299
  %v327 = vmul.f32 %v22, %v306
  %v328 = vmul.f32 %v23, %v306
  %v329 = vmul.f32 %v24, %v310
  %v330 = vmul.f32 %v25, %v310
  %v331 = vmul.f32 %v26, %v314
  %v332 = vmul.f32 %v27, %v314
  %v333 = vmul.f32 %v28, %v318
  %v334 = vmul.f32 %v29, %v318
  %335 = vst [vmem:[%s3] sm:$0xff] %v319
  %336 = vst [vmem:[%s3 + $0x8] sm:$0xff] %v320
  %337 = vst [vmem:[%s3 + $0x10] sm:$0xff] %v321
  %338 = vst [vmem:[%s3 + $0x18] sm:$0xff] %v322
  %339 = vst [vmem:[%s3 + $0x20] sm:$0xff] %v323
  %340 = vst [vmem:[%s3 + $0x28] sm:$0xff] %v324
  %341 = vst [vmem:[%s3 + $0x30] sm:$0xff] %v325
  %342 = vst [vmem:[%s3 + $0x38] sm:$0xff] %v326
  %343 = vst [vmem:[%s3 + $0x40] sm:$0xff] %v327
  %344 = vst [vmem:[%s3 + $0x48] sm:$0xff] %v328
  %345 = vst [vmem:[%s3 + $0x50] sm:$0xff] %v329
  %346 = vst [vmem:[%s3 + $0x58] sm:$0xff] %v330
  %347 = vst [vmem:[%s3 + $0x60] sm:$0xff] %v331
  %348 = vst [vmem:[%s3 + $0x68] sm:$0xff] %v332
  %349 = vst [vmem:[%s3 + $0x70] sm:$0xff] %v333
  %350 = vst [vmem:[%s3 + $0x78] sm:$0xff] %v334
  // Predicated region
  $region14: #{se_layer.1} parent=0 // pred_check
    _
  $region15: #{se_layer.1} parent=0 // pred_check_branch
    %352 = sbr.rel (0) target = $region17
  $region16: #{se_layer.1} parent=0 // pred_region
    _
  $region17: #{se_layer.1} parent=0 // pred_fallthru
    _
  // Predicated region
  $region18: #{se_layer.1} parent=0 // pred_check
    _
  $region19: #{se_layer.1} parent=0 // pred_check_branch
    %354 = sbr.rel (0) target = $region21
  $region20: #{se_layer.1} parent=0 // pred_region
    _
  $region21: #{se_layer.1} parent=0 // pred_fallthru
    _

</llo_original>
